<compile_context>
chip_gen: v7x
topology: tpu7x:2x2x1
jax: 0.10.0
libtpu: 0.0.40
codegen_flags: <defaults>
</compile_context>

<pallas_src>
import functools
import math

import jax
import jax.numpy as jnp
from jax import lax
from jax.experimental import pallas as pl
from jax.experimental.pallas import tpu as pltpu


def _head_kernel(x_ref, wqkv_ref, o_ref, *,
                 batch_block, seq_len, n_embd, head_size,
                 window_size, masked, mxu_dtype, approx_recip):
    # x_ref:    (Bt*T, C)     activations, pre-flattened (possibly bf16)
    # wqkv_ref: (C, 3*H)      fused [Wq | Wk | Wv]
    # o_ref:    (Bt, 1, T*H)  lane-dense output slab
    Bt, T, C, H = batch_block, seq_len, n_embd, head_size

    # --- Fused QKV projection: one lane-dense (Bt*T, C) @ (C, 3H) MXU call ---
    qkv = jnp.dot(x_ref[...], wqkv_ref[...],
                  preferred_element_type=jnp.float32)              # (Bt*T, 3H) f32

    # Fold the attention scale (C**-0.5; the PyTorch code scales by n_embd,
    # not head_size) into q: O(T*H) instead of O(T*T) VPU work.  Cast q/k/v to
    # mxu_dtype so every MXU call has native-rate operands; accumulation stays
    # f32 via preferred_element_type below.
    scale = C ** -0.5
    q = (qkv[:, 0 * H:1 * H] * scale).astype(mxu_dtype).reshape(Bt, T, H)
    k = qkv[:, 1 * H:2 * H].astype(mxu_dtype).reshape(Bt, T, H)
    v = qkv[:, 2 * H:3 * H].astype(mxu_dtype).reshape(Bt, T, H)

    # --- Scores: batched q @ k^T, contracting last dims (no explicit k.T) ---
    wei = lax.dot_general(q, k, (((2,), (2,)), ((0,), (0,))),
                          preferred_element_type=jnp.float32)      # (Bt, T, T) f32

    # --- Window + causal masks, built batch-independently at (1, T, T) and
    #     broadcast over Bt by one select.  -1e10 underflows to exactly 0
    #     after exp, and (window_size >= 0) every row keeps its diagonal, so
    #     this matches the reference -inf / wei*wm - 1e10*(1-wm) semantics. ---
    keep = None
    if window_size is not None or masked:
        rows = lax.broadcasted_iota(jnp.int32, (1, T, T), 1)
        cols = lax.broadcasted_iota(jnp.int32, (1, T, T), 2)
        if window_size is not None:
            diff = cols - rows
            keep = jnp.logical_and(diff >= -window_size, diff <= window_size)
        if masked:
            causal = cols <= rows
            keep = causal if keep is None else jnp.logical_and(keep, causal)
    if keep is not None:
        wei = jnp.where(keep, wei, -1.0e10)

    # --- Numerically stable softmax in f32 ---
    m = jnp.max(wei, axis=-1, keepdims=True)
    p = jnp.exp(wei - m)
    s = jnp.sum(p, axis=-1, keepdims=True)
    if approx_recip:
        p = p * pl.reciprocal(s, approx=True)    # EUP reciprocal, ~free slot
    else:
        p = p / s                                # strict-f32 validation path

    # TODO(synk): dropout on `p` is identity here (p=0 / eval mode); training
    # dropout would use pltpu.prng_seed + pltpu.prng_random_bits.
    # TODO(synk): `self.map` (stashing the attention matrix) is a side effect;
    # expose it as a second lane-dense output if it is ever needed.

    # --- out = p @ v on the MXU (mxu_dtype operands, f32 accumulate) ---
    out = lax.dot_general(p.astype(mxu_dtype), v,
                          (((2,), (1,)), ((0,), (0,))),
                          preferred_element_type=jnp.float32)      # (Bt, T, H)

    # --- Store into the lane-dense (Bt, 1, T*H) slab.  T (= block_size) is
    #     small, so a static unrolled loop of H-wide lane slices is cheap; the
    #     payoff is that the output block has a 128-lane minor dim -> dense
    #     HBM writeback.  A fused multi-head kernel (n_heads*H >= 128) would
    #     collapse this into a single unmasked full-lane store. ---
    out = out.astype(o_ref.dtype)
    for t in range(T):
        o_ref[:, 0, t * H:(t + 1) * H] = out[:, t, :]


def _pick_batch_block(B, T):
    """Largest divisor of B with Bt*T <= ~2048 rows (amortize the ~0.35us
    per-grid-step overhead and grow the MXU M-dim) while keeping at least two
    grid steps when B >= 2 so both v7x TensorCores get work (1 TC on v5e/v6e,
    where the cap is harmless)."""
    target = max(1, 2048 // max(T, 1))
    if B >= 2:
        target = min(target, B // 2)
    target = max(1, target)
    bt = 1
    for d in range(1, B + 1):
        if B % d == 0 and d <= target:
            bt = d
    return bt


def head_forward(x, w_key, w_query, w_value, *, window_size=None, masked=True,
                 mxu_dtype=jnp.float32, batch_block=None):
    """Single attention head forward pass.

    x: (B, T, C); w_*: (C, head_size) (PyTorch Linear weight, transposed).
    Returns (B, T, head_size) in x.dtype.

    mxu_dtype=jnp.bfloat16 is the recommended production path on v5e, v6e and
    v7x alike (bf16-native MXUs, halved x DMA traffic); all mask/softmax math
    stays in f32 regardless.  The default f32 path matches the PyTorch
    reference to ~1e-5.
    """
    B, T, C = x.shape
    H = w_key.shape[1]
    assert window_size is None or window_size >= 0, (
        "window_size must be >= 0 so every row keeps its diagonal; otherwise "
        "the -1e10 masking trick would diverge from the reference semantics.")

    bt = batch_block if batch_block is not None else _pick_batch_block(B, T)
    assert B % bt == 0, "batch_block must divide B"

    approx_recip = bool(jnp.result_type(mxu_dtype) != jnp.float32)

    # Fuse the three projection weights into one lane-dense (C, 3H) RHS and
    # pre-flatten x to (B*T, C) (free, row-major) so the kernel's projection
    # consumes a clean 2-D block with no in-kernel reshape.
    w_qkv = jnp.concatenate([w_query, w_key, w_value], axis=1).astype(mxu_dtype)
    x_in = x.reshape(B * T, C).astype(mxu_dtype)

    kernel = functools.partial(_head_kernel, batch_block=bt, seq_len=T,
                               n_embd=C, head_size=H,
                               window_size=window_size, masked=masked,
                               mxu_dtype=mxu_dtype, approx_recip=approx_recip)

    flops = 2 * B * T * C * (3 * H) + 2 * (2 * B * T * T * H)
    bytes_accessed = (x_in.size * x_in.dtype.itemsize
                      + w_qkv.size * w_qkv.dtype.itemsize
                      + B * T * H * x.dtype.itemsize)
    cost = pl.CostEstimate(flops=flops, transcendentals=B * T * T,
                           bytes_accessed=bytes_accessed)

    # TODO(synk): for non-toy T, add a kv grid axis with online-softmax (flash)
    # accumulators instead of materializing the (T, T) score block, sizing the
    # tiles against v7x's 64 MiB VMEM (vs 128 MiB on v5e/v6e).
    # TODO(synk): a fused multi-head kernel (W_qkv of shape (C, 3*n_heads*H),
    # output last dim n_heads*H >= 128) would fill the MXU N-dim and turn the
    # store into one unmasked vst; out of scope for the single-head module.
    out = pl.pallas_call(
        kernel,
        out_shape=jax.ShapeDtypeStruct((B, 1, T * H), x.dtype),
        grid_spec=pltpu.PrefetchScalarGridSpec(
            num_scalar_prefetch=0,
            grid=(B // bt,),
            in_specs=[
                pl.BlockSpec((bt * T, C), lambda b: (b, 0)),
                pl.BlockSpec((C, 3 * H), lambda b: (0, 0)),
            ],
            out_specs=pl.BlockSpec((bt, 1, T * H), lambda b: (b, 0, 0)),
        ),
        compiler_params=pltpu.CompilerParams(
            dimension_semantics=("parallel",),
            vmem_limit_bytes=32 * 1024 * 1024),
        cost_estimate=cost,
    )(x_in, w_qkv)
    # (B, 1, T*H) -> (B, T, H): row-major identical, free relabel.
    return out.reshape(B, T, H)


def reference_forward(x, w_key, w_query, w_value, *, window_size, masked):
    """Pure-JAX reference mirroring the PyTorch forward literally."""
    B, T, C = x.shape
    k = x @ w_key
    q = x @ w_query
    v = x @ w_value
    wei = jnp.einsum("btd,bsd->bts", q, k) * (C ** -0.5)
    rows = jnp.arange(T)[:, None]
    cols = jnp.arange(T)[None, :]
    if window_size is not None:
        wm = ((cols - rows >= -window_size) &
              (cols - rows <= window_size)).astype(x.dtype)
        wei = wei * wm - 1.0e10 * (1.0 - wm)
    if masked:
        wei = jnp.where(cols <= rows, wei, -jnp.inf)
    wei = jax.nn.softmax(wei, axis=-1)
    return wei @ v


if __name__ == "__main__":
    # Module config (small, consistent with the PyTorch __init__ signature)
    n_embd = 32
    head_size = 16
    block_size = 8      # == T
    dropout = 0.0       # eval-mode / p=0 -> identity
    window_size = 2
    masked = True

    B, T, C = 2, block_size, n_embd

    key = jax.random.PRNGKey(0)
    kx, kk, kq, kv = jax.random.split(key, 4)

    x = jax.random.normal(kx, (B, T, C), dtype=jnp.float32)
    # nn.Linear(n_embd, head_size, bias=False) weights, stored transposed (C, H)
    bound = 1.0 / math.sqrt(n_embd)
    w_key = jax.random.uniform(kk, (C, head_size), jnp.float32, -bound, bound)
    w_query = jax.random.uniform(kq, (C, head_size), jnp.float32, -bound, bound)
    w_value = jax.random.uniform(kv, (C, head_size), jnp.float32, -bound, bound)

    ref = reference_forward(x, w_key, w_query, w_value,
                            window_size=window_size, masked=masked)

    # Strict f32 MXU path: must match the PyTorch-mirroring reference tightly.
    out = head_forward(x, w_key, w_query, w_value,
                       window_size=window_size, masked=masked,
                       mxu_dtype=jnp.float32)
    out = jax.block_until_ready(out)
    assert out.shape == (B, T, head_size)
    assert jnp.allclose(out, ref, atol=1e-5, rtol=1e-5), "f32 mismatch vs reference"

    # bf16-operand MXU path (recommended on v5e/v6e/v7x), f32 accumulate.
    out_bf16 = head_forward(x, w_key, w_query, w_value,
                            window_size=window_size, masked=masked,
                            mxu_dtype=jnp.bfloat16)
    out_bf16 = jax.block_until_ready(out_bf16)
    assert jnp.allclose(out_bf16, ref, atol=5e-2, rtol=5e-2), "bf16 mismatch vs reference"

    # No-window / no-causal-mask configuration (cheap sanity check).
    out2 = head_forward(x, w_key, w_query, w_value,
                        window_size=None, masked=False)
    ref2 = reference_forward(x, w_key, w_query, w_value,
                             window_size=None, masked=False)
    assert jnp.allclose(jax.block_until_ready(out2), ref2, atol=1e-5, rtol=1e-5)

    print("KERNEL_OK")
</pallas_src>

<mosaic_0001>
module attributes {stable_mosaic.version = 11 : i64} {
  func.func @_head_kernel(%arg0: i32, %arg1: memref<8x32xf32, #tpu.memory_space<vmem>>, %arg2: memref<32x48xf32, #tpu.memory_space<vmem>>, %arg3: memref<1x1x128xf32, #tpu.memory_space<vmem>>) attributes {dimension_semantics = [#tpu.dimension_semantics<parallel>], iteration_bounds = array<i64: 2>, scalar_prefetch = 0 : i64, scratch_operands = 0 : i64, tpu.core_type = #tpu.core_type<tc>, window_params = [{transform_indices = @transform_0, window_bounds = array<i64: 8, 32>}, {pipeline_mode = #tpu.pipeline_mode<synchronous>, transform_indices = @transform_1, window_bounds = array<i64: 32, 48>}, {transform_indices = @transform_2, window_bounds = array<i64: 1, 1, 128>}]} {
    %c0 = arith.constant 0 : index
    %c0_0 = arith.constant 0 : index
    %0 = vector.load %arg1[%c0, %c0_0] : memref<8x32xf32, #tpu.memory_space<vmem>>, vector<8x32xf32>
    %c0_1 = arith.constant 0 : index
    %c0_2 = arith.constant 0 : index
    %1 = vector.load %arg2[%c0_1, %c0_2] : memref<32x48xf32, #tpu.memory_space<vmem>>, vector<32x48xf32>
    %cst = arith.constant dense<0.000000e+00> : vector<8x48xf32>
    %2 = tpu.matmul %0, %1, %cst {dimension_numbers = #tpu.dot_dimension_numbers<[1], [0], [0], [1], [0, 0, 1, 1], [], []>} : vector<8x32xf32>, vector<32x48xf32>, vector<8x48xf32> -> vector<8x48xf32>
    %3 = vector.extract_strided_slice %2 {offsets = [0, 0], sizes = [8, 16], strides = [1, 1]} : vector<8x48xf32> to vector<8x16xf32>
    %cst_3 = arith.constant 0.176776692 : f32
    %4 = vector.broadcast %cst_3 : f32 to vector<8x16xf32>
    %5 = arith.mulf %3, %4 : vector<8x16xf32>
    %6 = vector.shape_cast %5 : vector<8x16xf32> to vector<1x8x16xf32>
    %7 = vector.extract_strided_slice %2 {offsets = [0, 16], sizes = [8, 16], strides = [1, 1]} : vector<8x48xf32> to vector<8x16xf32>
    %8 = vector.shape_cast %7 : vector<8x16xf32> to vector<1x8x16xf32>
    %9 = vector.extract_strided_slice %2 {offsets = [0, 32], sizes = [8, 16], strides = [1, 1]} : vector<8x48xf32> to vector<8x16xf32>
    %10 = vector.shape_cast %9 : vector<8x16xf32> to vector<1x8x16xf32>
    %cst_4 = arith.constant dense<0.000000e+00> : vector<1x8x8xf32>
    %11 = tpu.matmul %6, %8, %cst_4 {dimension_numbers = #tpu.dot_dimension_numbers<[2], [2], [1], [1], [0, 0, 0, 1, 1, 1], [0], [0]>} : vector<1x8x16xf32>, vector<1x8x16xf32>, vector<1x8x8xf32> -> vector<1x8x8xf32>
    %12 = tpu.iota {dimensions = array<i32: 1>} : vector<1x8x8xi32>
    %13 = tpu.iota {dimensions = array<i32: 2>} : vector<1x8x8xi32>
    %14 = arith.subi %13, %12 : vector<1x8x8xi32>
    %c-2_i32 = arith.constant -2 : i32
    %15 = vector.broadcast %c-2_i32 : i32 to vector<1x8x8xi32>
    %16 = arith.cmpi sge, %14, %15 : vector<1x8x8xi32>
    %c2_i32 = arith.constant 2 : i32
    %17 = vector.broadcast %c2_i32 : i32 to vector<1x8x8xi32>
    %18 = arith.cmpi sle, %14, %17 : vector<1x8x8xi32>
    %19 = arith.andi %16, %18 : vector<1x8x8xi1>
    %20 = arith.cmpi sle, %13, %12 : vector<1x8x8xi32>
    %21 = arith.andi %19, %20 : vector<1x8x8xi1>
    %cst_5 = arith.constant -1.000000e+10 : f32
    %22 = vector.broadcast %cst_5 : f32 to vector<1x8x8xf32>
    %23 = arith.select %21, %11, %22 : vector<1x8x8xi1>, vector<1x8x8xf32>
    %cst_6 = arith.constant dense<0xFF800000> : vector<1x8xf32>
    %24 = vector.multi_reduction <maximumf>, %23, %cst_6 [2] : vector<1x8x8xf32> to vector<1x8xf32>
    %25 = vector.shape_cast %24 : vector<1x8xf32> to vector<1x8x1xf32>
    %26 = vector.broadcast %25 : vector<1x8x1xf32> to vector<1x8x8xf32>
    %27 = arith.subf %23, %26 : vector<1x8x8xf32>
    %28 = math.exp %27 : vector<1x8x8xf32>
    %cst_7 = arith.constant dense<0.000000e+00> : vector<1x8xf32>
    %29 = vector.multi_reduction <add>, %28, %cst_7 [2] : vector<1x8x8xf32> to vector<1x8xf32>
    %30 = vector.shape_cast %29 : vector<1x8xf32> to vector<1x8x1xf32>
    %31 = vector.broadcast %30 : vector<1x8x1xf32> to vector<1x8x8xf32>
    %32 = arith.divf %28, %31 : vector<1x8x8xf32>
    %cst_8 = arith.constant dense<0.000000e+00> : vector<1x8x16xf32>
    %33 = tpu.matmul %32, %10, %cst_8 {dimension_numbers = #tpu.dot_dimension_numbers<[2], [1], [1], [2], [0, 0, 0, 1, 1, 2], [0], [0]>} : vector<1x8x8xf32>, vector<1x8x16xf32>, vector<1x8x16xf32> -> vector<1x8x16xf32>
    %34 = vector.extract_strided_slice %33 {offsets = [0, 0, 0], sizes = [1, 1, 16], strides = [1, 1, 1]} : vector<1x8x16xf32> to vector<1x1x16xf32>
    %35 = vector.shape_cast %34 : vector<1x1x16xf32> to vector<1x16xf32>
    %c0_9 = arith.constant 0 : index
    %c0_10 = arith.constant 0 : index
    %c0_11 = arith.constant 0 : index
    %36 = vector.load %arg3[%c0_9, %c0_10, %c0_11] : memref<1x1x128xf32, #tpu.memory_space<vmem>>, vector<1x1x16xf32>
    %37 = vector.shape_cast %36 : vector<1x1x16xf32> to vector<1x16xf32>
    %38 = vector.shape_cast %35 : vector<1x16xf32> to vector<1x1x16xf32>
    tpu.vector_store %arg3[%c0_9, %c0_10, %c0_11], %38 {strides = array<i32>} : memref<1x1x128xf32, #tpu.memory_space<vmem>>, vector<1x1x16xf32>,
    %39 = vector.extract_strided_slice %33 {offsets = [0, 1, 0], sizes = [1, 1, 16], strides = [1, 1, 1]} : vector<1x8x16xf32> to vector<1x1x16xf32>
    %40 = vector.shape_cast %39 : vector<1x1x16xf32> to vector<1x16xf32>
    %c0_12 = arith.constant 0 : index
    %c0_13 = arith.constant 0 : index
    %c16 = arith.constant 16 : index
    %41 = vector.load %arg3[%c0_12, %c0_13, %c16] : memref<1x1x128xf32, #tpu.memory_space<vmem>>, vector<1x1x16xf32>
    %42 = vector.shape_cast %41 : vector<1x1x16xf32> to vector<1x16xf32>
    %43 = vector.shape_cast %40 : vector<1x16xf32> to vector<1x1x16xf32>
    tpu.vector_store %arg3[%c0_12, %c0_13, %c16], %43 {strides = array<i32>} : memref<1x1x128xf32, #tpu.memory_space<vmem>>, vector<1x1x16xf32>,
    %44 = vector.extract_strided_slice %33 {offsets = [0, 2, 0], sizes = [1, 1, 16], strides = [1, 1, 1]} : vector<1x8x16xf32> to vector<1x1x16xf32>
    %45 = vector.shape_cast %44 : vector<1x1x16xf32> to vector<1x16xf32>
    %c0_14 = arith.constant 0 : index
    %c0_15 = arith.constant 0 : index
    %c32 = arith.constant 32 : index
    %46 = vector.load %arg3[%c0_14, %c0_15, %c32] : memref<1x1x128xf32, #tpu.memory_space<vmem>>, vector<1x1x16xf32>
    %47 = vector.shape_cast %46 : vector<1x1x16xf32> to vector<1x16xf32>
    %48 = vector.shape_cast %45 : vector<1x16xf32> to vector<1x1x16xf32>
    tpu.vector_store %arg3[%c0_14, %c0_15, %c32], %48 {strides = array<i32>} : memref<1x1x128xf32, #tpu.memory_space<vmem>>, vector<1x1x16xf32>,
    %49 = vector.extract_strided_slice %33 {offsets = [0, 3, 0], sizes = [1, 1, 16], strides = [1, 1, 1]} : vector<1x8x16xf32> to vector<1x1x16xf32>
    %50 = vector.shape_cast %49 : vector<1x1x16xf32> to vector<1x16xf32>
    %c0_16 = arith.constant 0 : index
    %c0_17 = arith.constant 0 : index
    %c48 = arith.constant 48 : index
    %51 = vector.load %arg3[%c0_16, %c0_17, %c48] : memref<1x1x128xf32, #tpu.memory_space<vmem>>, vector<1x1x16xf32>
    %52 = vector.shape_cast %51 : vector<1x1x16xf32> to vector<1x16xf32>
    %53 = vector.shape_cast %50 : vector<1x16xf32> to vector<1x1x16xf32>
    tpu.vector_store %arg3[%c0_16, %c0_17, %c48], %53 {strides = array<i32>} : memref<1x1x128xf32, #tpu.memory_space<vmem>>, vector<1x1x16xf32>,
    %54 = vector.extract_strided_slice %33 {offsets = [0, 4, 0], sizes = [1, 1, 16], strides = [1, 1, 1]} : vector<1x8x16xf32> to vector<1x1x16xf32>
    %55 = vector.shape_cast %54 : vector<1x1x16xf32> to vector<1x16xf32>
    %c0_18 = arith.constant 0 : index
    %c0_19 = arith.constant 0 : index
    %c64 = arith.constant 64 : index
    %56 = vector.load %arg3[%c0_18, %c0_19, %c64] : memref<1x1x128xf32, #tpu.memory_space<vmem>>, vector<1x1x16xf32>
    %57 = vector.shape_cast %56 : vector<1x1x16xf32> to vector<1x16xf32>
    %58 = vector.shape_cast %55 : vector<1x16xf32> to vector<1x1x16xf32>
    tpu.vector_store %arg3[%c0_18, %c0_19, %c64], %58 {strides = array<i32>} : memref<1x1x128xf32, #tpu.memory_space<vmem>>, vector<1x1x16xf32>,
    %59 = vector.extract_strided_slice %33 {offsets = [0, 5, 0], sizes = [1, 1, 16], strides = [1, 1, 1]} : vector<1x8x16xf32> to vector<1x1x16xf32>
    %60 = vector.shape_cast %59 : vector<1x1x16xf32> to vector<1x16xf32>
    %c0_20 = arith.constant 0 : index
    %c0_21 = arith.constant 0 : index
    %c80 = arith.constant 80 : index
    %61 = vector.load %arg3[%c0_20, %c0_21, %c80] : memref<1x1x128xf32, #tpu.memory_space<vmem>>, vector<1x1x16xf32>
    %62 = vector.shape_cast %61 : vector<1x1x16xf32> to vector<1x16xf32>
    %63 = vector.shape_cast %60 : vector<1x16xf32> to vector<1x1x16xf32>
    tpu.vector_store %arg3[%c0_20, %c0_21, %c80], %63 {strides = array<i32>} : memref<1x1x128xf32, #tpu.memory_space<vmem>>, vector<1x1x16xf32>,
    %64 = vector.extract_strided_slice %33 {offsets = [0, 6, 0], sizes = [1, 1, 16], strides = [1, 1, 1]} : vector<1x8x16xf32> to vector<1x1x16xf32>
    %65 = vector.shape_cast %64 : vector<1x1x16xf32> to vector<1x16xf32>
    %c0_22 = arith.constant 0 : index
    %c0_23 = arith.constant 0 : index
    %c96 = arith.constant 96 : index
    %66 = vector.load %arg3[%c0_22, %c0_23, %c96] : memref<1x1x128xf32, #tpu.memory_space<vmem>>, vector<1x1x16xf32>
    %67 = vector.shape_cast %66 : vector<1x1x16xf32> to vector<1x16xf32>
    %68 = vector.shape_cast %65 : vector<1x16xf32> to vector<1x1x16xf32>
    tpu.vector_store %arg3[%c0_22, %c0_23, %c96], %68 {strides = array<i32>} : memref<1x1x128xf32, #tpu.memory_space<vmem>>, vector<1x1x16xf32>,
    %69 = vector.extract_strided_slice %33 {offsets = [0, 7, 0], sizes = [1, 1, 16], strides = [1, 1, 1]} : vector<1x8x16xf32> to vector<1x1x16xf32>
    %70 = vector.shape_cast %69 : vector<1x1x16xf32> to vector<1x16xf32>
    %c0_24 = arith.constant 0 : index
    %c0_25 = arith.constant 0 : index
    %c112 = arith.constant 112 : index
    %71 = vector.load %arg3[%c0_24, %c0_25, %c112] : memref<1x1x128xf32, #tpu.memory_space<vmem>>, vector<1x1x16xf32>
    %72 = vector.shape_cast %71 : vector<1x1x16xf32> to vector<1x16xf32>
    %73 = vector.shape_cast %70 : vector<1x16xf32> to vector<1x1x16xf32>
    tpu.vector_store %arg3[%c0_24, %c0_25, %c112], %73 {strides = array<i32>} : memref<1x1x128xf32, #tpu.memory_space<vmem>>, vector<1x1x16xf32>,
    return
  }
  func.func @transform_0(%arg0: i32) -> (i32, i32) {
    %c0_i32 = arith.constant 0 : i32
    %c0_i32_0 = arith.constant 0 : i32
    return %arg0, %c0_i32 : i32, i32
  }
  func.func @transform_1(%arg0: i32) -> (i32, i32) {
    %c0_i32 = arith.constant 0 : i32
    %c0_i32_0 = arith.constant 0 : i32
    %c0_i32_1 = arith.constant 0 : i32
    return %c0_i32, %c0_i32_0 : i32, i32
  }
  func.func @transform_2(%arg0: i32) -> (i32, i32, i32) {
    %c0_i32 = arith.constant 0 : i32
    %c0_i32_0 = arith.constant 0 : i32
    %c0_i32_1 = arith.constant 0 : i32
    return %arg0, %c0_i32, %c0_i32_0 : i32, i32, i32
  }
}

</mosaic_0001>

<llo_original>
// kernel: tpu_custom_call.1
$region0: #{tpu_custom_call.1}
  #allocation0 [shape = 'u32[]', space=smem, size = 0x4, offset = 0x4, fixed_abs, tag = 'smem constant byte address 0x4 - core index']
  #allocation1 [shape = 'u32[144,128]{1,0:T(1,128)}', space=vmem, size = 0x12000, scoped, tag = 'internal scratch']
  %s0 = inlined_call_operand.hbm [shape: f32[16,32], index: 0, kind: input, shape index: {}]
  %s1 = inlined_call_operand.hbm [shape: f32[32,48], index: 1, kind: input, shape index: {}]
  %s2 = inlined_call_operand.hbm [shape: f32[2,1,128], index: 2, kind: output, shape index: {}]
  %s3 = sld [smem:[#allocation0]]
  $region49: #{tpu_custom_call.1} parent=0
    _
  %s5 = ssub.s32 1, %s3
  %s6 = scalar_select 0, %s5, %s3
  $region1: #{tpu_custom_call.1} parent=0
    #allocation2 [shape = 'u8[8192]{0}', space=vmem, size = 0x2000, scoped, tag = 'input window, operand 0']
    #allocation3 [shape = 's32[2]{0}', space=sflag, size = 0x8, scoped, tag = 'scoped memory for tpu_custom_call.1']
    #allocation4 [shape = 's32[2]{0}', space=sflag, size = 0x8, scoped, tag = 'scoped memory for tpu_custom_call.1']
    #allocation5 [shape = 'u8[16384]{0}', space=vmem, size = 0x4000, scoped, tag = 'input window, operand 1, single buffered']
    #allocation6 [shape = 's32[1]{0}', space=sflag, size = 0x4, scoped, tag = 'scoped memory for tpu_custom_call.1']
    #allocation7 [shape = 'u8[1024]{0}', space=vmem, size = 0x400, scoped, tag = 'output window, operand 0']
    %7 = vsyncpa [#allocation3], 0
    %s8 = scalar_lea.sflag [#allocation3], 1
    %9 = vsyncpa %s8, 0
    %10 = vsyncpa [#allocation6], 0
    %11 = vsyncpa [#allocation4], 0
    %s12 = scalar_lea.sflag [#allocation4], 1
    %13 = vsyncpa %s12, 0
    loop: start=0, step=1, limit=4
    $region2: #{tpu_custom_call.1} parent=1 // loop_pre_header
      _
    $region3: #{tpu_custom_call.1} parent=1 // loop_header
      %s15 = sphi 0, %s19
      %p16 = scmp.ge.s32.totalorder %s15, 4
      %s25 = sphi 0, %s27
      %s28 = sphi 0, %s25
      %s29 = sphi 0, %s28
      %s45 = sphi 0, %s29
      %s49 = sphi 0, %s49
      %s51 = sphi 0, %s49
      %s52 = sphi 0, %s51
      %s66 = sphi 0, %s52
      %s72 = sphi 0, %s74
      %s75 = sphi 0, %s72
      %s76 = sphi 0, %s75
      %s92 = sphi 0, %s76
    $region4: #{tpu_custom_call.1} parent=1 // loop_header_branch
      %18 = sbr.rel (%p16) target = $region8
    $region5: #{tpu_custom_call.1} parent=1 // loop_body
      %s20 = ssub.s32 %s15, 1
      %s21 = ssub.s32 %s15, 2
      %s22 = sadd.s32 %s15, 1
      %s23 = ssub.s32 %s15, %s22
      %p24 = scmp.eq.s32.totalorder %s23, 0
      %s26 = sadd.s32 %s25, 1
      %s27 = scalar_select %p24, %s25, %s26
      %p30 = pneg %p24
      %p31 = scmp.eq.s32.totalorder %s15, 1
      %p32 = por %p30, %p31
      %p33 = scmp.ne.s32.totalorder %s25, %s28
      %p34 = scmp.eq.s32.totalorder %s15, 0
      %p35 = por %p33, %p34
      %p36 = scmp.ne.s32.totalorder %s25, %s28
      %p37 = scmp.eq.s32.totalorder %s20, 1
      %p38 = por %p36, %p37
      %p39 = scmp.ne.s32.totalorder %s28, %s29
      %p40 = scmp.eq.s32.totalorder %s20, 0
      %p41 = por %p39, %p40
      %p42 = scmp.ne.s32.totalorder %s28, %s29
      %p43 = scmp.eq.s32.totalorder %s21, 1
      %p44 = por %p42, %p43
      %p46 = scmp.ne.s32.totalorder %s29, %s45
      %p47 = scmp.eq.s32.totalorder %s21, 0
      %p48 = por %p46, %p47
      %s50 = sadd.s32 %s49, 1
      %p53 = scmp.eq.s32.totalorder %s15, 1
      %p54 = scmp.ne.s32.totalorder %s49, %s51
      %p55 = scmp.eq.s32.totalorder %s15, 0
      %p56 = por %p54, %p55
      %p57 = scmp.ne.s32.totalorder %s49, %s51
      %p58 = scmp.eq.s32.totalorder %s20, 1
      %p59 = por %p57, %p58
      %p60 = scmp.ne.s32.totalorder %s51, %s52
      %p61 = scmp.eq.s32.totalorder %s20, 0
      %p62 = por %p60, %p61
      %p63 = scmp.ne.s32.totalorder %s51, %s52
      %p64 = scmp.eq.s32.totalorder %s21, 1
      %p65 = por %p63, %p64
      %p67 = scmp.ne.s32.totalorder %s52, %s66
      %p68 = scmp.eq.s32.totalorder %s21, 0
      %p69 = por %p67, %p68
      %s70 = ssub.s32 %s15, %s22
      %p71 = scmp.eq.s32.totalorder %s70, 0
      %s73 = sadd.s32 %s72, 1
      %s74 = scalar_select %p71, %s72, %s73
      %p77 = pneg %p71
      %p78 = scmp.eq.s32.totalorder %s15, 1
      %p79 = por %p77, %p78
      %p80 = scmp.ne.s32.totalorder %s72, %s75
      %p81 = scmp.eq.s32.totalorder %s15, 0
      %p82 = por %p80, %p81
      %p83 = scmp.ne.s32.totalorder %s72, %s75
      %p84 = scmp.eq.s32.totalorder %s20, 1
      %p85 = por %p83, %p84
      %p86 = scmp.ne.s32.totalorder %s75, %s76
      %p87 = scmp.eq.s32.totalorder %s20, 0
      %p88 = por %p86, %p87
      %p89 = scmp.ne.s32.totalorder %s75, %s76
      %p90 = scmp.eq.s32.totalorder %s21, 1
      %p91 = por %p89, %p90
      %p93 = scmp.ne.s32.totalorder %s76, %s92
      %p94 = scmp.eq.s32.totalorder %s21, 0
      %p95 = por %p93, %p94
      %p96 = scmp.le.s32.totalorder 1, %s15
      %p97 = scmp.lt.s32.totalorder %s15, 3
      %p98 = pnand %p96, %p97
      %p99 = pneg %p98
      // Predicated region
      $region9: #{tpu_custom_call.1} parent=5 // pred_check
        _
      $region10: #{tpu_custom_call.1} parent=5 // pred_check_branch
        %101 = sbr.rel (%p98) target = $region12
      $region11: #{tpu_custom_call.1} parent=5 // pred_region
        %s102 = ssub.s32 %s15, 1
        // Predicated region
        $region13: #{tpu_custom_call.1} parent=11 // pred_check
          %p103 = pneg %p62
        $region14: #{tpu_custom_call.1} parent=11 // pred_check_branch
          %105 = sbr.rel (%p103) target = $region16
        $region15: #{tpu_custom_call.1} parent=11 // pred_region
          %s107 = ssub.s32 512, 512
          %108 = vsyncadd [#allocation6], %s107
          %s109 = sshll.u32 [#allocation5], 4
          %s110 = int_to_ptr.vmem [resolvable:$true] %s109
          %115 = dma.hbm_to_vmem [thread:$0]  %s1, 512, %s110, [#allocation6], 128, 128, 8
        $region16: #{tpu_custom_call.1} parent=11 // pred_fallthru
          _
      $region12: #{tpu_custom_call.1} parent=5 // pred_fallthru
        _
      %p116 = scmp.lt.s32.totalorder %s15, 2
      // Predicated region
      $region17: #{tpu_custom_call.1} parent=5 // pred_check
        %p117 = pneg %p116
      $region18: #{tpu_custom_call.1} parent=5 // pred_check_branch
        %119 = sbr.rel (%p117) target = $region20
      $region19: #{tpu_custom_call.1} parent=5 // pred_region
        // Predicated region
        $region21: #{tpu_custom_call.1} parent=19 // pred_check
          %p120 = pneg %p35
        $region22: #{tpu_custom_call.1} parent=19 // pred_check_branch
          %122 = sbr.rel (%p120) target = $region24
        $region23: #{tpu_custom_call.1} parent=19 // pred_region
          %s123 = sand.u32 %s25, 1
          %s124 = scalar_lea.sflag [#allocation3], %s123
          %s125 = sand.u32 %s25, 1
          %s126 = smul.addr %s125, 8
          %s127 = scalar_lea.vmem [#allocation2], %s126
          %s129 = ssub.s32 128, 128
          %130 = vsyncadd %s124, %s129
          %s131 = smul.addr %s15, 128
          %s132 = scalar_lea.hbm %s0, %s131
          %s134 = sshll.u32 %s127, 4
          %s135 = int_to_ptr.vmem [resolvable:$true] %s134
          %137 = dma.hbm_to_vmem [thread:$0]  %s132, 128, %s135, %s124
        $region24: #{tpu_custom_call.1} parent=19 // pred_fallthru
          _
      $region20: #{tpu_custom_call.1} parent=5 // pred_fallthru
        _
      %p138 = scmp.le.s32.totalorder 1, %s15
      %p139 = scmp.lt.s32.totalorder %s15, 3
      %p140 = pnand %p138, %p139
      %p141 = pneg %p140
      // Predicated region
      $region25: #{tpu_custom_call.1} parent=5 // pred_check
        _
      $region26: #{tpu_custom_call.1} parent=5 // pred_check_branch
        %143 = sbr.rel (%p140) target = $region28
      $region27: #{tpu_custom_call.1} parent=5 // pred_region
        %s144 = ssub.s32 %s15, 1
        %s145 = sand.u32 %s28, 1
        %s146 = scalar_lea.sflag [#allocation3], %s145
        %s147 = sand.u32 %s28, 1
        %s148 = smul.addr %s147, 8
        %s149 = scalar_lea.vmem [#allocation2], %s148
        // Predicated region
        $region29: #{tpu_custom_call.1} parent=27 // pred_check
          %p150 = pneg %p41
        $region30: #{tpu_custom_call.1} parent=27 // pred_check_branch
          %152 = sbr.rel (%p150) target = $region32
        $region31: #{tpu_custom_call.1} parent=27 // pred_region
          %153 = dma.done %s146, 128
        $region32: #{tpu_custom_call.1} parent=27 // pred_fallthru
          _
        // Predicated region
        $region33: #{tpu_custom_call.1} parent=27 // pred_check
          %p154 = pneg %p62
        $region34: #{tpu_custom_call.1} parent=27 // pred_check_branch
          %156 = sbr.rel (%p154) target = $region36
        $region35: #{tpu_custom_call.1} parent=27 // pred_region
          %157 = dma.done [#allocation6], 512
        $region36: #{tpu_custom_call.1} parent=27 // pred_fallthru
          _
        %s158 = sand.u32 %s28, 1
        %s159 = scalar_lea.sflag [#allocation3], %s158
        %s160 = sand.u32 %s28, 1
        %s161 = smul.addr %s160, 8
        %s162 = scalar_lea.vmem [#allocation2], %s161
        %p163 = pneg %p41
        %p164 = pneg %p38
        %p165 = pneg %p62
        %p166 = pneg %p59
        %p167 = pneg %p88
        %p168 = pneg %p85
        %s169 = sand.u32 %s75, 1
        %s170 = scalar_lea.sflag [#allocation4], %s169
        %s171 = sand.u32 %s75, 1
        %s172 = scalar_lea.vmem [#allocation7], %s171
        %v173 = vld [vmem:[%s149] sm:$0xff]
        %v174 = vld [vmem:[#allocation5] sm:$0xff]
        %v175 = vld [vmem:[#allocation5 + $0x8] sm:$0xff]
        %v176 = vld [vmem:[#allocation5 + $0x10] sm:$0xff]
        %v177 = vld [vmem:[#allocation5 + $0x18] sm:$0xff]
        %vm178 = vcmask 261120
        %v180 = vsel %vm178, %v173, 0
        %182 = vmatprep.subr.mxu0 0.0
        %183 = vmatpush1.msra.mxu0 %v174
        %184 = vmatprep.subr.mxu0 0.0
        %185 = vmatpush1.msra.mxu0 %v175
        %186 = vmatprep.subr.mxu0 0.0
        %187 = vmatpush1.msra.mxu0 %v176
        %188 = vmatprep.subr.mxu0 0.0
        %189 = vmatpush1.msra.mxu0 %v177
        %190 = vmatprep.subr.mxu0 0.0
        %191 = vmatpush1.msra.mxu0 0.0
        %192 = vmatprep.subr.mxu0 0.0
        %193 = vmatpush1.msra.mxu0 0.0
        %194 = vmatprep.subr.mxu0 0.0
        %195 = vmatpush1.msra.mxu0 0.0
        %196 = vmatprep.subr.mxu0 0.0
        %197 = vmatpush1.msra.mxu0 0.0
        %198 = vmatprep.subr.mxu0 0.0
        %199 = vmatpush1.msra.mxu0 0.0
        %200 = vmatprep.subr.mxu0 0.0
        %201 = vmatpush1.msra.mxu0 0.0
        %202 = vmatprep.subr.mxu0 0.0
        %203 = vmatpush1.msra.mxu0 0.0
        %204 = vmatprep.subr.mxu0 0.0
        %205 = vmatpush1.msra.mxu0 0.0
        %206 = vmatprep.subr.mxu0 0.0
        %207 = vmatpush1.msra.mxu0 0.0
        %208 = vmatprep.subr.mxu0 0.0
        %209 = vmatpush1.msra.mxu0 0.0
        %210 = vmatprep.subr.mxu0 0.0
        %211 = vmatpush1.msra.mxu0 0.0
        %212 = vmatprep.subr.mxu0 0.0
        %213 = vmatpush1.msra.mxu0 0.0
        %214 = vmatprep.subr.mxu0 0.0
        %215 = vmatpush1.msra.mxu0 0.0
        %216 = vmatprep.subr.mxu0 0.0
        %217 = vmatpush1.msra.mxu0 0.0
        %218 = vmatprep.subr.mxu0 0.0
        %219 = vmatpush1.msra.mxu0 0.0
        %220 = vmatprep.subr.mxu0 0.0
        %221 = vmatpush1.msra.mxu0 0.0
        %222 = vmatprep.subr.mxu0 0.0
        %223 = vmatpush1.msra.mxu0 0.0
        %224 = vmatprep.subr.mxu0 0.0
        %225 = vmatpush1.msra.mxu0 0.0
        %226 = vmatprep.subr.mxu0 0.0
        %227 = vmatpush1.msra.mxu0 0.0
        %228 = vmatprep.subr.mxu0 0.0
        %229 = vmatpush1.msra.mxu0 0.0
        %230 = vmatprep.subr.mxu0 0.0
        %231 = vmatpush1.msra.mxu0 0.0
        %232 = vmatprep.subr.mxu0 0.0
        %233 = vmatpush1.msra.mxu0 0.0
        %234 = vmatprep.subr.mxu0 0.0
        %235 = vmatpush1.msra.mxu0 0.0
        %236 = vmatprep.subr.mxu0 0.0
        %237 = vmatpush1.msra.mxu0 0.0
        %238 = vmatprep.subr.mxu0 0.0
        %239 = vmatpush1.msra.mxu0 0.0
        %240 = vmatprep.subr.mxu0 0.0
        %241 = vmatpush1.msra.mxu0 0.0
        %242 = vmatprep.subr.mxu0 0.0
        %243 = vmatpush1.msra.mxu0 0.0
        %244 = vmatprep.subr.mxu0 0.0
        %245 = vmatpush1.msra.mxu0 0.0
        %246 = vmatprep.mubr.f32.mxu0 0.0
        %247 = vmatmul.mubr.f32.gmra.mrb[0].mxu0 %v180
        %v248 = vpop.f32.mrb[0].mxu0
        %v249 = vadd.f32 0.0, %v248
        %v250 = vpop.f32.mrb[0].mxu0
        %251 = vdwg.mxu0
        %v252 = vmul.f32 %v249, 0.17677669
        %254 = vrot.lane.b32.xlu0 %v249, 112
        %v255 = vpop.permute.xlu0 %254
        %vm256 = vcmask 130048
        %v258 = vsel %vm256, %v252, 0
        %v260 = vsel %vm256, %v255, 0
        %262 = vmatprep.subr.mxu0 0.0
        %263 = vmatpush1.xpose.msra.mxu0 %v260
        %264 = vmatprep.subr.mxu0 0.0
        %265 = vmatpush1.xpose.msra.mxu0 0.0
        %266 = vmatprep.subr.mxu0 0.0
        %267 = vmatpush1.xpose.msra.mxu0 0.0
        %268 = vmatprep.subr.mxu0 0.0
        %269 = vmatpush1.xpose.msra.mxu0 0.0
        %270 = vmatprep.subr.mxu0 0.0
        %271 = vmatpush1.xpose.msra.mxu0 0.0
        %272 = vmatprep.subr.mxu0 0.0
        %273 = vmatpush1.xpose.msra.mxu0 0.0
        %274 = vmatprep.subr.mxu0 0.0
        %275 = vmatpush1.xpose.msra.mxu0 0.0
        %276 = vmatprep.subr.mxu0 0.0
        %277 = vmatpush1.xpose.msra.mxu0 0.0
        %278 = vmatprep.subr.mxu0 0.0
        %279 = vmatpush1.xpose.msra.mxu0 0.0
        %280 = vmatprep.subr.mxu0 0.0
        %281 = vmatpush1.xpose.msra.mxu0 0.0
        %282 = vmatprep.subr.mxu0 0.0
        %283 = vmatpush1.xpose.msra.mxu0 0.0
        %284 = vmatprep.subr.mxu0 0.0
        %285 = vmatpush1.xpose.msra.mxu0 0.0
        %286 = vmatprep.subr.mxu0 0.0
        %287 = vmatpush1.xpose.msra.mxu0 0.0
        %288 = vmatprep.subr.mxu0 0.0
        %289 = vmatpush1.xpose.msra.mxu0 0.0
        %290 = vmatprep.subr.mxu0 0.0
        %291 = vmatpush1.xpose.msra.mxu0 0.0
        %292 = vmatprep.subr.mxu0 0.0
        %293 = vmatpush1.xpose.msra.mxu0 0.0
        %294 = vmatprep.subr.mxu0 0.0
        %295 = vmatpush1.xpose.msra.mxu0 0.0
        %296 = vmatprep.subr.mxu0 0.0
        %297 = vmatpush1.xpose.msra.mxu0 0.0
        %298 = vmatprep.subr.mxu0 0.0
        %299 = vmatpush1.xpose.msra.mxu0 0.0
        %300 = vmatprep.subr.mxu0 0.0
        %301 = vmatpush1.xpose.msra.mxu0 0.0
        %302 = vmatprep.subr.mxu0 0.0
        %303 = vmatpush1.xpose.msra.mxu0 0.0
        %304 = vmatprep.subr.mxu0 0.0
        %305 = vmatpush1.xpose.msra.mxu0 0.0
        %306 = vmatprep.subr.mxu0 0.0
        %307 = vmatpush1.xpose.msra.mxu0 0.0
        %308 = vmatprep.subr.mxu0 0.0
        %309 = vmatpush1.xpose.msra.mxu0 0.0
        %310 = vmatprep.subr.mxu0 0.0
        %311 = vmatpush1.xpose.msra.mxu0 0.0
        %312 = vmatprep.subr.mxu0 0.0
        %313 = vmatpush1.xpose.msra.mxu0 0.0
        %314 = vmatprep.subr.mxu0 0.0
        %315 = vmatpush1.xpose.msra.mxu0 0.0
        %316 = vmatprep.subr.mxu0 0.0
        %317 = vmatpush1.xpose.msra.mxu0 0.0
        %318 = vmatprep.subr.mxu0 0.0
        %319 = vmatpush1.xpose.msra.mxu0 0.0
        %320 = vmatprep.subr.mxu0 0.0
        %321 = vmatpush1.xpose.msra.mxu0 0.0
        %322 = vmatprep.subr.mxu0 0.0
        %323 = vmatpush1.xpose.msra.mxu0 0.0
        %324 = vmatprep.subr.mxu0 0.0
        %325 = vmatpush1.xpose.msra.mxu0 0.0
        %326 = vmatprep.mubr.f32.mxu0 0.0
        %327 = vmatmul.mubr.f32.gmra.mrb[0].mxu0 %v258
        %v328 = vpop.f32.mrb[0].mxu0
        %v329 = vadd.f32 0.0, %v328
        %v330 = vpop.f32.mrb[0].mxu0
        %331 = vdwg.mxu0
        %v332 = vlaneseq
        %v333 = vshrl.u32 %v332, 7
        %v334 = vlaneseq
        %v335 = vand.u32 %v334, 127
        %v336 = vsub.s32 %v335, %v333
        %vm337 = vcmp.ge.s32.totalorder %v336, 4294967294
        %vm338 = vcmp.le.s32.totalorder %v336, 2
        %vm339 = vmand %vm337, %vm338
        %vm340 = vcmp.le.s32.totalorder %v335, %v333
        %vm341 = vmand %vm339, %vm340
        %v342 = vsel %vm341, %v329, -1e+10
        %vm343 = vcmask 64512
        %v344 = vsel %vm343, %v342, -inf
        %345 = vmax.xlane.f32.xlu0 %v344
        %v346 = vpop.xlane.xlu0 %345
        %v347 = vsub.f32 %v342, %v346
        %v348 = vmul.f32 %v347, 1.442695
        %v349 = vpow.pop %v348
        %v350 = vsel %vm343, %v349, 0.0
        %351 = vadd.xlane.f32.xlu0 %v350
        %v352 = vpop.xlane.xlu0 %351
        %v353 = vrcp.pop %v352
        %v354 = vmul.f32 %v349, %v353
        %355 = vrot.lane.b32.xlu0 %v249, 96
        %v356 = vpop.permute.xlu0 %355
        %v359 = vsel %vm343, %v354, 0
        %361 = vmatprep.subr.mxu0 0.0
        %362 = vmatpush1.msra.mxu0 %v356
        %363 = vmatprep.subr.mxu0 0.0
        %364 = vmatpush1.msra.mxu0 0.0
        %365 = vmatprep.subr.mxu0 0.0
        %366 = vmatpush1.msra.mxu0 0.0
        %367 = vmatprep.subr.mxu0 0.0
        %368 = vmatpush1.msra.mxu0 0.0
        %369 = vmatprep.subr.mxu0 0.0
        %370 = vmatpush1.msra.mxu0 0.0
        %371 = vmatprep.subr.mxu0 0.0
        %372 = vmatpush1.msra.mxu0 0.0
        %373 = vmatprep.subr.mxu0 0.0
        %374 = vmatpush1.msra.mxu0 0.0
        %375 = vmatprep.subr.mxu0 0.0
        %376 = vmatpush1.msra.mxu0 0.0
        %377 = vmatprep.subr.mxu0 0.0
        %378 = vmatpush1.msra.mxu0 0.0
        %379 = vmatprep.subr.mxu0 0.0
        %380 = vmatpush1.msra.mxu0 0.0
        %381 = vmatprep.subr.mxu0 0.0
        %382 = vmatpush1.msra.mxu0 0.0
        %383 = vmatprep.subr.mxu0 0.0
        %384 = vmatpush1.msra.mxu0 0.0
        %385 = vmatprep.subr.mxu0 0.0
        %386 = vmatpush1.msra.mxu0 0.0
        %387 = vmatprep.subr.mxu0 0.0
        %388 = vmatpush1.msra.mxu0 0.0
        %389 = vmatprep.subr.mxu0 0.0
        %390 = vmatpush1.msra.mxu0 0.0
        %391 = vmatprep.subr.mxu0 0.0
        %392 = vmatpush1.msra.mxu0 0.0
        %393 = vmatprep.subr.mxu0 0.0
        %394 = vmatpush1.msra.mxu0 0.0
        %395 = vmatprep.subr.mxu0 0.0
        %396 = vmatpush1.msra.mxu0 0.0
        %397 = vmatprep.subr.mxu0 0.0
        %398 = vmatpush1.msra.mxu0 0.0
        %399 = vmatprep.subr.mxu0 0.0
        %400 = vmatpush1.msra.mxu0 0.0
        %401 = vmatprep.subr.mxu0 0.0
        %402 = vmatpush1.msra.mxu0 0.0
        %403 = vmatprep.subr.mxu0 0.0
        %404 = vmatpush1.msra.mxu0 0.0
        %405 = vmatprep.subr.mxu0 0.0
        %406 = vmatpush1.msra.mxu0 0.0
        %407 = vmatprep.subr.mxu0 0.0
        %408 = vmatpush1.msra.mxu0 0.0
        %409 = vmatprep.subr.mxu0 0.0
        %410 = vmatpush1.msra.mxu0 0.0
        %411 = vmatprep.subr.mxu0 0.0
        %412 = vmatpush1.msra.mxu0 0.0
        %413 = vmatprep.subr.mxu0 0.0
        %414 = vmatpush1.msra.mxu0 0.0
        %415 = vmatprep.subr.mxu0 0.0
        %416 = vmatpush1.msra.mxu0 0.0
        %417 = vmatprep.subr.mxu0 0.0
        %418 = vmatpush1.msra.mxu0 0.0
        %419 = vmatprep.subr.mxu0 0.0
        %420 = vmatpush1.msra.mxu0 0.0
        %421 = vmatprep.subr.mxu0 0.0
        %422 = vmatpush1.msra.mxu0 0.0
        %423 = vmatprep.subr.mxu0 0.0
        %424 = vmatpush1.msra.mxu0 0.0
        %425 = vmatprep.mubr.f32.mxu0 0.0
        %426 = vmatmul.mubr.f32.gmra.mrb[0].mxu0 %v359
        %v427 = vpop.f32.mrb[0].mxu0
        %v428 = vadd.f32 0.0, %v427
        %v429 = vpop.f32.mrb[0].mxu0
        %430 = vdwg.mxu0
        %vm431 = vcmask 122880
        %432 = vst.msk [vmem:[%s172] sm:$0x1] %vm431, %v428
        %434 = vrot.lane.b32.xlu0 %v428, 16
        %v435 = vpop.permute.xlu0 %434
        %vm437 = vcmask 255105
        %438 = vst.msk [vmem:[%s172 - $0x1] sm:$0x2] %vm437, %v435
        %439 = vrot.lane.b32.xlu0 %v428, 32
        %v440 = vpop.permute.xlu0 %439
        %vm442 = vcmask 387330
        %443 = vst.msk [vmem:[%s172 - $0x2] sm:$0x4] %vm442, %v440
        %444 = vrot.lane.b32.xlu0 %v428, 48
        %v445 = vpop.permute.xlu0 %444
        %vm447 = vcmask 519555
        %448 = vst.msk [vmem:[%s172 - $0x3] sm:$0x8] %vm447, %v445
        %449 = vrot.lane.b32.xlu0 %v428, 64
        %v450 = vpop.permute.xlu0 %449
        %vm452 = vcmask 651780
        %453 = vst.msk [vmem:[%s172 - $0x4] sm:$0x10] %vm452, %v450
        %454 = vrot.lane.b32.xlu0 %v428, 80
        %v455 = vpop.permute.xlu0 %454
        %vm457 = vcmask 784005
        %458 = vst.msk [vmem:[%s172 - $0x5] sm:$0x20] %vm457, %v455
        %459 = vrot.lane.b32.xlu0 %v428, 96
        %v460 = vpop.permute.xlu0 %459
        %vm462 = vcmask 916230
        %463 = vst.msk [vmem:[%s172 - $0x6] sm:$0x40] %vm462, %v460
        %464 = vrot.lane.b32.xlu0 %v428, 112
        %v465 = vpop.permute.xlu0 %464
        %vm467 = vcmask 1048455
        %468 = vst.msk [vmem:[%s172 - $0x7] sm:$0x80] %vm467, %v465
        %s469 = sand.u32 %s75, 1
        %s470 = scalar_lea.sflag [#allocation4], %s469
        %s471 = sand.u32 %s75, 1
        %s472 = scalar_lea.vmem [#allocation7], %s471
        // Predicated region
        $region37: #{tpu_custom_call.1} parent=27 // pred_check
          %p473 = pneg %p85
        $region38: #{tpu_custom_call.1} parent=27 // pred_check_branch
          %475 = sbr.rel (%p473) target = $region40
        $region39: #{tpu_custom_call.1} parent=27 // pred_region
          %s477 = ssub.s32 16, 16
          %478 = vsyncadd %s470, %s477
          %s479 = smul.addr %s20, 16
          %s480 = scalar_lea.hbm %s2, %s479
          %s482 = sshll.u32 %s472, 4
          %s483 = int_to_ptr.vmem [resolvable:$true] %s482
          %485 = dma.vmem_to_hbm [thread:$0]  %s483, 16, %s480, %s470
        $region40: #{tpu_custom_call.1} parent=27 // pred_fallthru
          _
      $region28: #{tpu_custom_call.1} parent=5 // pred_fallthru
        _
      %p486 = scmp.le.s32.totalorder 2, %s15
      // Predicated region
      $region41: #{tpu_custom_call.1} parent=5 // pred_check
        %p487 = pneg %p486
      $region42: #{tpu_custom_call.1} parent=5 // pred_check_branch
        %489 = sbr.rel (%p487) target = $region44
      $region43: #{tpu_custom_call.1} parent=5 // pred_region
        %s490 = ssub.s32 %s15, 2
        // Predicated region
        $region45: #{tpu_custom_call.1} parent=43 // pred_check
          %p491 = pneg %p91
        $region46: #{tpu_custom_call.1} parent=43 // pred_check_branch
          %493 = sbr.rel (%p491) target = $region48
        $region47: #{tpu_custom_call.1} parent=43 // pred_region
          %s494 = sand.u32 %s76, 1
          %s495 = scalar_lea.sflag [#allocation4], %s494
          %s496 = sand.u32 %s76, 1
          %s497 = scalar_lea.vmem [#allocation7], %s496
          %498 = dma.done %s495, 16
        $region48: #{tpu_custom_call.1} parent=43 // pred_fallthru
          _
      $region44: #{tpu_custom_call.1} parent=5 // pred_fallthru
        _
    $region6: #{tpu_custom_call.1} parent=1 // loop_footer
      %s19 = sadd.s32 1, %s15
    $region7: #{tpu_custom_call.1} parent=1 // loop_footer_branch
      %14 = sbr.rel target = $region3
    $region8: #{tpu_custom_call.1} parent=1 // loop_exit
      _
    %499 = vsyncpa [#allocation3], 1
    %s500 = scalar_lea.sflag [#allocation3], 1
    %501 = vsyncpa %s500, 1
    %502 = vsyncpa [#allocation6], 1
    %503 = vsyncpa [#allocation4], 1
    %s504 = scalar_lea.sflag [#allocation4], 1
    %505 = vsyncpa %s504, 1

</llo_original>
